<compile_context>
chip_gen: v6e
topology: v6e:2x2x1
jax: 0.10.0
libtpu: 0.0.40
codegen_flags: <defaults>
</compile_context>

<pallas_src>
import functools

import jax
import jax.numpy as jnp
from jax.experimental import pallas as pl
from jax.experimental.pallas import tpu as pltpu

LANE = 128                      # TPU lane width
COMPUTE_DTYPE = jnp.bfloat16    # matmul operand dtype (accumulation is f32)
VMEM_LIMIT_BYTES = 48 * 1024 * 1024   # explicit cap, safe on v7x (64 MiB phys)
VMEM_TILE_BUDGET = 40 * 1024 * 1024   # headroom under the explicit cap
TM_TARGET = 512                 # node row tile target
TK_TARGET = 2048                # contraction (neighbor) tile target
TM_PROJ_TARGET = 1024           # projection row tile target


def _round_up(x, m):
    return ((x + m - 1) // m) * m


def _divisor_tiles(n_pad, quantum):
    """Divisors of n_pad that are multiples of `quantum`, descending."""
    return [d for d in range(n_pad, quantum - 1, -quantum) if n_pad % d == 0]


def _choose_tiles(n_pad, f_out):
    """Pick (tm, tk) for the aggregation kernel.

    Largest 128-multiple divisors of n_pad up to the targets, shrunk until the
    estimated VMEM working set (double-buffered A tile + resident XW + f32
    accumulator + output block) fits the budget. Prefers >= 2 row tiles so the
    parallel axis can shard across both v7x TensorCores.
    """
    cands = _divisor_tiles(n_pad, LANE)

    def est(tm, tk):
        a_tile = 2 * tm * tk * 2          # double-buffered bf16 A tiles
        xw_res = 2 * n_pad * f_out * 2    # resident XW (counted conservatively)
        acc = tm * f_out * 4              # f32 accumulator scratch
        out = 2 * tm * f_out * 4          # output blocks (f32 worst case)
        bias = 2 * f_out * 4
        return a_tile + xw_res + acc + out + bias

    tm = max([t for t in cands if t <= TM_TARGET], default=min(cands))
    if n_pad // tm < 2:                   # megacore: keep >= 2 row tiles if possible
        smaller = [t for t in cands if n_pad // t >= 2]
        if smaller:
            tm = max(smaller)

    tk = max([t for t in cands if t <= TK_TARGET], default=min(cands))
    while est(tm, tk) > VMEM_TILE_BUDGET:
        nxt = [t for t in cands if t < tk]
        if not nxt:
            break
        tk = max(nxt)
    while est(tm, tk) > VMEM_TILE_BUDGET:
        nxt = [t for t in cands if t < tm]
        if not nxt:
            break
        tm = max(nxt)
    return tm, tk


# ---------------------------------------------------------------------------
# Kernel 1: feature projection  XW = X @ W   (row-tiled, lane-dense output)
# ---------------------------------------------------------------------------
def _project_kernel(x_ref, w_ref, o_ref):
    o_ref[...] = jnp.dot(
        x_ref[...], w_ref[...], preferred_element_type=jnp.float32
    ).astype(o_ref.dtype)


def project(x_pad, w_pad, *, tm):
    n_pad, f_in = x_pad.shape
    f_out = w_pad.shape[1]
    return pl.pallas_call(
        _project_kernel,
        out_shape=jax.ShapeDtypeStruct((n_pad, f_out), COMPUTE_DTYPE),
        grid_spec=pltpu.PrefetchScalarGridSpec(
            num_scalar_prefetch=0,
            grid=(n_pad // tm,),
            in_specs=[
                pl.BlockSpec((tm, f_in), lambda i: (i, 0)),
                pl.BlockSpec((f_in, f_out), lambda i: (0, 0)),
            ],
            out_specs=pl.BlockSpec((tm, f_out), lambda i: (i, 0)),
        ),
        compiler_params=pltpu.CompilerParams(
            dimension_semantics=("parallel",),
            vmem_limit_bytes=VMEM_LIMIT_BYTES,
        ),
    )(x_pad, w_pad)


# ---------------------------------------------------------------------------
# Kernel 2: tiled aggregation  out = A_hat @ XW + b (+ ReLU)
#   grid = (row tiles, contraction tiles)
#   * A_hat tiles stream from HBM (dominant, bandwidth-bound stream)
#   * XW is fully VMEM-resident (constant-index BlockSpec, one DMA total);
#     the k-chunk is sliced in-kernel.
#   * f32 accumulator in VMEM; bias/ReLU/cast epilogue only at k == last.
# ---------------------------------------------------------------------------
def _aggregate_kernel(a_ref, xw_ref, b_ref, o_ref, acc_ref, *, tk, apply_relu):
    k = pl.program_id(1)

    @pl.when(k == 0)
    def _():
        acc_ref[...] = jnp.zeros_like(acc_ref)

    start = pl.multiple_of(k * tk, tk)
    acc_ref[...] += jnp.dot(
        a_ref[...], xw_ref[pl.ds(start, tk), :],
        preferred_element_type=jnp.float32,
    )

    # Bias / ReLU / cast only once, in the k == last epilogue.
    @pl.when(k == pl.num_programs(1) - 1)
    def _():
        h = acc_ref[...] + b_ref[...]
        if apply_relu:
            h = jnp.maximum(h, 0.0)
        o_ref[...] = h.astype(o_ref.dtype)


def aggregate(a_hat, xw, b, *, apply_relu, out_dtype, tm, tk):
    n_pad = a_hat.shape[0]
    f_out = xw.shape[1]
    kernel = functools.partial(_aggregate_kernel, tk=tk, apply_relu=apply_relu)
    return pl.pallas_call(
        kernel,
        out_shape=jax.ShapeDtypeStruct((n_pad, f_out), out_dtype),
        grid_spec=pltpu.PrefetchScalarGridSpec(
            num_scalar_prefetch=0,
            grid=(n_pad // tm, n_pad // tk),
            in_specs=[
                pl.BlockSpec((tm, tk), lambda i, k: (i, k)),        # A_hat tile
                pl.BlockSpec((n_pad, f_out), lambda i, k: (0, 0)),  # XW, resident
                pl.BlockSpec((1, f_out), lambda i, k: (0, 0)),      # bias row
            ],
            out_specs=pl.BlockSpec((tm, f_out), lambda i, k: (i, 0)),
            scratch_shapes=[pltpu.VMEM((tm, f_out), jnp.float32)],
        ),
        compiler_params=pltpu.CompilerParams(
            dimension_semantics=("parallel", "arbitrary"),
            vmem_limit_bytes=VMEM_LIMIT_BYTES,
        ),
    )(a_hat, xw, b)


def gcn_layer(a_hat_pad, x_pad, w_pad, b_pad, *, apply_relu, out_dtype,
              tm, tk, tm_proj):
    """One GCNConv layer on padded operands: A_hat @ (x @ w) + b (+ ReLU)."""
    xw = project(x_pad, w_pad, tm=tm_proj)
    return aggregate(
        a_hat_pad, xw, b_pad, apply_relu=apply_relu, out_dtype=out_dtype,
        tm=tm, tk=tk,
    )


# ---------------------------------------------------------------------------
# Plain-JAX glue: normalized adjacency (built once), padding, init, forward.
# ---------------------------------------------------------------------------
def build_normalized_adj_padded(edge_index, num_nodes, n_pad,
                                dtype=COMPUTE_DTYPE):
    """Dense D^{-1/2} (A + I) D^{-1/2}, built directly into the padded buffer.

    Duplicate edges are summed (scatter-add) and self-loops are only added to
    real nodes that do not already have one, matching PyG's gcn_norm. Padded
    rows/columns stay exactly zero (deg 0 -> d^{-1/2} = 0). Hoisted out of the
    per-forward path: call once per (static) graph and reuse.
    """
    # TODO(synk): dense O(N^2) adjacency; a real large-graph port would keep a
    # sparse/padded-CSR layout and gather neighbor blocks with scalar-prefetch
    # (P2) indexing instead of streaming N^2 entries.
    src, dst = edge_index[0], edge_index[1]
    a = jnp.zeros((n_pad, n_pad), jnp.float32).at[dst, src].add(1.0)
    diag_idx = jnp.arange(num_nodes)
    has_self = a[diag_idx, diag_idx] > 0
    a = a.at[diag_idx, diag_idx].add(jnp.where(has_self, 0.0, 1.0))
    deg = a.sum(axis=1)
    d_inv_sqrt = jnp.where(deg > 0, jax.lax.rsqrt(deg), 0.0)
    return (a * d_inv_sqrt[:, None] * d_inv_sqrt[None, :]).astype(dtype)


def glorot(key, shape, dtype=jnp.float32):
    fan_in, fan_out = shape
    limit = jnp.sqrt(6.0 / (fan_in + fan_out)).astype(dtype)
    return jax.random.uniform(key, shape, dtype, -limit, limit)


def _pad2d(x, rows, cols, dtype):
    out = jnp.zeros((rows, cols), dtype)
    return out.at[: x.shape[0], : x.shape[1]].set(x.astype(dtype))


def prepare_params(params, f_in, f_out):
    """Pad / cast parameters once (hoisted out of the per-forward path)."""
    f_in_pad = _round_up(f_in, LANE)
    f_pad = _round_up(f_out, LANE)
    return {
        "w1": _pad2d(params["w1"], f_in_pad, f_pad, COMPUTE_DTYPE),
        "b1": _pad2d(params["b1"].reshape(1, -1), 1, f_pad, jnp.float32),
        "w2": _pad2d(params["w2"], f_pad, f_pad, COMPUTE_DTYPE),
        "b2": _pad2d(params["b2"].reshape(1, -1), 1, f_pad, jnp.float32),
    }


@functools.partial(jax.jit, static_argnames=("f_out",))
def gcn_forward(x, a_pad, pp, *, f_out):
    n = x.shape[0]
    n_pad = a_pad.shape[0]
    f_in_pad = pp["w1"].shape[0]
    f_pad = pp["w1"].shape[1]

    tm, tk = _choose_tiles(n_pad, f_pad)
    tm_proj = max([t for t in _divisor_tiles(n_pad, LANE) if t <= TM_PROJ_TARGET],
                  default=LANE)

    # Lane-dense padded features (kept padded through both layers).
    x_pad = _pad2d(x, n_pad, f_in_pad, COMPUTE_DTYPE)

    h = gcn_layer(a_pad, x_pad, pp["w1"], pp["b1"], apply_relu=True,
                  out_dtype=COMPUTE_DTYPE, tm=tm, tk=tk, tm_proj=tm_proj)
    out = gcn_layer(a_pad, h, pp["w2"], pp["b2"], apply_relu=False,
                    out_dtype=jnp.float32, tm=tm, tk=tk, tm_proj=tm_proj)
    return out[:n, :f_out]


if __name__ == "__main__":
    key = jax.random.PRNGKey(0)
    k_x, k_e, k_w1, k_w2 = jax.random.split(key, 4)

    NUM_NODES = 16
    NUM_EDGES = 32
    IN_CHANNELS = 8
    OUT_CHANNELS = 32

    x = jax.random.normal(k_x, (NUM_NODES, IN_CHANNELS), jnp.float32)
    edge_index = jax.random.randint(k_e, (2, NUM_EDGES), 0, NUM_NODES, jnp.int32)

    # Deterministic parameter init (PyG GCNConv default: glorot weight, zero bias).
    params = {
        "w1": glorot(k_w1, (IN_CHANNELS, OUT_CHANNELS)),
        "b1": jnp.zeros((OUT_CHANNELS,), jnp.float32),
        "w2": glorot(k_w2, (OUT_CHANNELS, OUT_CHANNELS)),
        "b2": jnp.zeros((OUT_CHANNELS,), jnp.float32),
    }

    # Graph-static preprocessing, done once and reused for every forward.
    n_pad = _round_up(NUM_NODES, LANE)
    a_pad = build_normalized_adj_padded(edge_index, NUM_NODES, n_pad)
    pp = prepare_params(params, IN_CHANNELS, OUT_CHANNELS)
    jax.block_until_ready((a_pad, pp))

    out = gcn_forward(x, a_pad, pp, f_out=OUT_CHANNELS)
    jax.block_until_ready(out)
    assert out.shape == (NUM_NODES, OUT_CHANNELS)
    assert bool(jnp.all(jnp.isfinite(out)))
    print("KERNEL_OK")
</pallas_src>

<mosaic_0001>
module attributes {stable_mosaic.version = 11 : i64} {
  func.func @_project_kernel(%arg0: i32, %arg1: memref<128x128xbf16, #tpu.memory_space<vmem>>, %arg2: memref<128x128xbf16, #tpu.memory_space<vmem>>, %arg3: memref<128x128xbf16, #tpu.memory_space<vmem>>) attributes {dimension_semantics = [#tpu.dimension_semantics<parallel>], iteration_bounds = array<i64: 1>, scalar_prefetch = 0 : i64, scratch_operands = 0 : i64, tpu.core_type = #tpu.core_type<tc>, window_params = [{transform_indices = @transform_0, window_bounds = array<i64: 128, 128>}, {pipeline_mode = #tpu.pipeline_mode<synchronous>, transform_indices = @transform_1, window_bounds = array<i64: 128, 128>}, {transform_indices = @transform_2, window_bounds = array<i64: 128, 128>}]} {
    %c0 = arith.constant 0 : index
    %c0_0 = arith.constant 0 : index
    %0 = vector.load %arg1[%c0, %c0_0] : memref<128x128xbf16, #tpu.memory_space<vmem>>, vector<128x128xbf16>
    %c0_1 = arith.constant 0 : index
    %c0_2 = arith.constant 0 : index
    %1 = vector.load %arg2[%c0_1, %c0_2] : memref<128x128xbf16, #tpu.memory_space<vmem>>, vector<128x128xbf16>
    %cst = arith.constant dense<0.000000e+00> : vector<128x128xf32>
    %2 = tpu.matmul %0, %1, %cst {dimension_numbers = #tpu.dot_dimension_numbers<[1], [0], [0], [1], [0, 0, 1, 1], [], []>} : vector<128x128xbf16>, vector<128x128xbf16>, vector<128x128xf32> -> vector<128x128xf32>
    %3 = arith.truncf %2 : vector<128x128xf32> to vector<128x128xbf16>
    %c0_3 = arith.constant 0 : index
    %c0_4 = arith.constant 0 : index
    %4 = vector.load %arg3[%c0_3, %c0_4] : memref<128x128xbf16, #tpu.memory_space<vmem>>, vector<128x128xbf16>
    tpu.vector_store %arg3[%c0_3, %c0_4], %3 {strides = array<i32>} : memref<128x128xbf16, #tpu.memory_space<vmem>>, vector<128x128xbf16>,
    return
  }
  func.func @transform_0(%arg0: i32) -> (i32, i32) {
    %c0_i32 = arith.constant 0 : i32
    %c0_i32_0 = arith.constant 0 : i32
    return %arg0, %c0_i32 : i32, i32
  }
  func.func @transform_1(%arg0: i32) -> (i32, i32) {
    %c0_i32 = arith.constant 0 : i32
    %c0_i32_0 = arith.constant 0 : i32
    %c0_i32_1 = arith.constant 0 : i32
    return %c0_i32, %c0_i32_0 : i32, i32
  }
  func.func @transform_2(%arg0: i32) -> (i32, i32) {
    %c0_i32 = arith.constant 0 : i32
    %c0_i32_0 = arith.constant 0 : i32
    return %arg0, %c0_i32 : i32, i32
  }
}

module attributes {stable_mosaic.version = 11 : i64} {
  func.func @_aggregate_kernel(%arg0: i32, %arg1: i32, %arg2: memref<128x128xbf16, #tpu.memory_space<vmem>>, %arg3: memref<128x128xbf16, #tpu.memory_space<vmem>>, %arg4: memref<1x128xf32, #tpu.memory_space<vmem>>, %arg5: memref<128x128xf32, #tpu.memory_space<vmem>>, %arg6: memref<128x128xf32, #tpu.memory_space<vmem>>) attributes {dimension_semantics = [#tpu.dimension_semantics<parallel>, #tpu.dimension_semantics<arbitrary>], iteration_bounds = array<i64: 1, 1>, scalar_prefetch = 0 : i64, scratch_operands = 1 : i64, tpu.core_type = #tpu.core_type<tc>, window_params = [{transform_indices = @transform_0, window_bounds = array<i64: 128, 128>}, {pipeline_mode = #tpu.pipeline_mode<synchronous>, transform_indices = @transform_1, window_bounds = array<i64: 128, 128>}, {pipeline_mode = #tpu.pipeline_mode<synchronous>, transform_indices = @transform_2, window_bounds = array<i64: 1, 128>}, {transform_indices = @transform_3, window_bounds = array<i64: 128, 128>}]} {
    %c0_i32 = arith.constant 0 : i32
    %0 = arith.cmpi eq, %arg1, %c0_i32 : i32
    %1 = arith.extui %0 : i1 to i32
    %c0_i32_0 = arith.constant 0 : i32
    %2 = arith.cmpi ne, %1, %c0_i32_0 : i32
    scf.if %2 {
      %cst_9 = arith.constant 0.000000e+00 : f32
      %15 = vector.broadcast %cst_9 : f32 to vector<128x128xf32>
      %c0_10 = arith.constant 0 : index
      %c0_11 = arith.constant 0 : index
      %16 = vector.load %arg6[%c0_10, %c0_11] : memref<128x128xf32, #tpu.memory_space<vmem>>, vector<128x128xf32>
      tpu.vector_store %arg6[%c0_10, %c0_11], %15 {strides = array<i32>} : memref<128x128xf32, #tpu.memory_space<vmem>>, vector<128x128xf32>,
    } else {
    }
    %c128_i32 = arith.constant 128 : i32
    %3 = arith.muli %arg1, %c128_i32 : i32
    %4 = tpu.assume_multiple %3, 128 : i32
    %c0 = arith.constant 0 : index
    %c0_1 = arith.constant 0 : index
    %5 = vector.load %arg6[%c0, %c0_1] : memref<128x128xf32, #tpu.memory_space<vmem>>, vector<128x128xf32>
    %c0_2 = arith.constant 0 : index
    %c0_3 = arith.constant 0 : index
    %6 = vector.load %arg2[%c0_2, %c0_3] : memref<128x128xbf16, #tpu.memory_space<vmem>>, vector<128x128xbf16>
    %7 = arith.index_cast %4 : i32 to index
    %c0_4 = arith.constant 0 : index
    %8 = vector.load %arg3[%7, %c0_4] : memref<128x128xbf16, #tpu.memory_space<vmem>>, vector<128x128xbf16>
    %cst = arith.constant dense<0.000000e+00> : vector<128x128xf32>
    %9 = tpu.matmul %6, %8, %cst {dimension_numbers = #tpu.dot_dimension_numbers<[1], [0], [0], [1], [0, 0, 1, 1], [], []>} : vector<128x128xbf16>, vector<128x128xbf16>, vector<128x128xf32> -> vector<128x128xf32>
    %10 = arith.addf %5, %9 : vector<128x128xf32>
    %c0_5 = arith.constant 0 : index
    %c0_6 = arith.constant 0 : index
    %11 = vector.load %arg6[%c0_5, %c0_6] : memref<128x128xf32, #tpu.memory_space<vmem>>, vector<128x128xf32>
    tpu.vector_store %arg6[%c0_5, %c0_6], %10 {strides = array<i32>} : memref<128x128xf32, #tpu.memory_space<vmem>>, vector<128x128xf32>,
    %c0_i32_7 = arith.constant 0 : i32
    %12 = arith.cmpi eq, %arg1, %c0_i32_7 : i32
    %13 = arith.extui %12 : i1 to i32
    %c0_i32_8 = arith.constant 0 : i32
    %14 = arith.cmpi ne, %13, %c0_i32_8 : i32
    scf.if %14 {
      %c0_9 = arith.constant 0 : index
      %c0_10 = arith.constant 0 : index
      %15 = vector.load %arg6[%c0_9, %c0_10] : memref<128x128xf32, #tpu.memory_space<vmem>>, vector<128x128xf32>
      %c0_11 = arith.constant 0 : index
      %c0_12 = arith.constant 0 : index
      %16 = vector.load %arg4[%c0_11, %c0_12] : memref<1x128xf32, #tpu.memory_space<vmem>>, vector<1x128xf32>
      %17 = vector.broadcast %16 : vector<1x128xf32> to vector<128x128xf32>
      %18 = arith.addf %15, %17 : vector<128x128xf32>
      %c0_13 = arith.constant 0 : index
      %c0_14 = arith.constant 0 : index
      %19 = vector.load %arg5[%c0_13, %c0_14] : memref<128x128xf32, #tpu.memory_space<vmem>>, vector<128x128xf32>
      tpu.vector_store %arg5[%c0_13, %c0_14], %18 {strides = array<i32>} : memref<128x128xf32, #tpu.memory_space<vmem>>, vector<128x128xf32>,
    } else {
    }
    return
  }
  func.func @transform_0(%arg0: i32, %arg1: i32) -> (i32, i32) {
    %c0_i32 = arith.constant 0 : i32
    return %arg0, %arg1 : i32, i32
  }
  func.func @transform_1(%arg0: i32, %arg1: i32) -> (i32, i32) {
    %c0_i32 = arith.constant 0 : i32
    %c0_i32_0 = arith.constant 0 : i32
    %c0_i32_1 = arith.constant 0 : i32
    return %c0_i32, %c0_i32_0 : i32, i32
  }
  func.func @transform_2(%arg0: i32, %arg1: i32) -> (i32, i32) {
    %c0_i32 = arith.constant 0 : i32
    %c0_i32_0 = arith.constant 0 : i32
    %c0_i32_1 = arith.constant 0 : i32
    return %c0_i32, %c0_i32_0 : i32, i32
  }
  func.func @transform_3(%arg0: i32, %arg1: i32) -> (i32, i32) {
    %c0_i32 = arith.constant 0 : i32
    %c0_i32_0 = arith.constant 0 : i32
    return %arg0, %c0_i32 : i32, i32
  }
}

module attributes {stable_mosaic.version = 11 : i64} {
  func.func @_aggregate_kernel(%arg0: i32, %arg1: i32, %arg2: memref<128x128xbf16, #tpu.memory_space<vmem>>, %arg3: memref<128x128xbf16, #tpu.memory_space<vmem>>, %arg4: memref<1x128xf32, #tpu.memory_space<vmem>>, %arg5: memref<128x128xbf16, #tpu.memory_space<vmem>>, %arg6: memref<128x128xf32, #tpu.memory_space<vmem>>) attributes {dimension_semantics = [#tpu.dimension_semantics<parallel>, #tpu.dimension_semantics<arbitrary>], iteration_bounds = array<i64: 1, 1>, scalar_prefetch = 0 : i64, scratch_operands = 1 : i64, tpu.core_type = #tpu.core_type<tc>, window_params = [{transform_indices = @transform_0, window_bounds = array<i64: 128, 128>}, {pipeline_mode = #tpu.pipeline_mode<synchronous>, transform_indices = @transform_1, window_bounds = array<i64: 128, 128>}, {pipeline_mode = #tpu.pipeline_mode<synchronous>, transform_indices = @transform_2, window_bounds = array<i64: 1, 128>}, {transform_indices = @transform_3, window_bounds = array<i64: 128, 128>}]} {
    %c0_i32 = arith.constant 0 : i32
    %0 = arith.cmpi eq, %arg1, %c0_i32 : i32
    %1 = arith.extui %0 : i1 to i32
    %c0_i32_0 = arith.constant 0 : i32
    %2 = arith.cmpi ne, %1, %c0_i32_0 : i32
    scf.if %2 {
      %cst_9 = arith.constant 0.000000e+00 : f32
      %15 = vector.broadcast %cst_9 : f32 to vector<128x128xf32>
      %c0_10 = arith.constant 0 : index
      %c0_11 = arith.constant 0 : index
      %16 = vector.load %arg6[%c0_10, %c0_11] : memref<128x128xf32, #tpu.memory_space<vmem>>, vector<128x128xf32>
      tpu.vector_store %arg6[%c0_10, %c0_11], %15 {strides = array<i32>} : memref<128x128xf32, #tpu.memory_space<vmem>>, vector<128x128xf32>,
    } else {
    }
    %c128_i32 = arith.constant 128 : i32
    %3 = arith.muli %arg1, %c128_i32 : i32
    %4 = tpu.assume_multiple %3, 128 : i32
    %c0 = arith.constant 0 : index
    %c0_1 = arith.constant 0 : index
    %5 = vector.load %arg6[%c0, %c0_1] : memref<128x128xf32, #tpu.memory_space<vmem>>, vector<128x128xf32>
    %c0_2 = arith.constant 0 : index
    %c0_3 = arith.constant 0 : index
    %6 = vector.load %arg2[%c0_2, %c0_3] : memref<128x128xbf16, #tpu.memory_space<vmem>>, vector<128x128xbf16>
    %7 = arith.index_cast %4 : i32 to index
    %c0_4 = arith.constant 0 : index
    %8 = vector.load %arg3[%7, %c0_4] : memref<128x128xbf16, #tpu.memory_space<vmem>>, vector<128x128xbf16>
    %cst = arith.constant dense<0.000000e+00> : vector<128x128xf32>
    %9 = tpu.matmul %6, %8, %cst {dimension_numbers = #tpu.dot_dimension_numbers<[1], [0], [0], [1], [0, 0, 1, 1], [], []>} : vector<128x128xbf16>, vector<128x128xbf16>, vector<128x128xf32> -> vector<128x128xf32>
    %10 = arith.addf %5, %9 : vector<128x128xf32>
    %c0_5 = arith.constant 0 : index
    %c0_6 = arith.constant 0 : index
    %11 = vector.load %arg6[%c0_5, %c0_6] : memref<128x128xf32, #tpu.memory_space<vmem>>, vector<128x128xf32>
    tpu.vector_store %arg6[%c0_5, %c0_6], %10 {strides = array<i32>} : memref<128x128xf32, #tpu.memory_space<vmem>>, vector<128x128xf32>,
    %c0_i32_7 = arith.constant 0 : i32
    %12 = arith.cmpi eq, %arg1, %c0_i32_7 : i32
    %13 = arith.extui %12 : i1 to i32
    %c0_i32_8 = arith.constant 0 : i32
    %14 = arith.cmpi ne, %13, %c0_i32_8 : i32
    scf.if %14 {
      %c0_9 = arith.constant 0 : index
      %c0_10 = arith.constant 0 : index
      %15 = vector.load %arg6[%c0_9, %c0_10] : memref<128x128xf32, #tpu.memory_space<vmem>>, vector<128x128xf32>
      %c0_11 = arith.constant 0 : index
      %c0_12 = arith.constant 0 : index
      %16 = vector.load %arg4[%c0_11, %c0_12] : memref<1x128xf32, #tpu.memory_space<vmem>>, vector<1x128xf32>
      %17 = vector.broadcast %16 : vector<1x128xf32> to vector<128x128xf32>
      %18 = arith.addf %15, %17 : vector<128x128xf32>
      %cst_13 = arith.constant 0.000000e+00 : f32
      %19 = vector.broadcast %cst_13 : f32 to vector<128x128xf32>
      %20 = arith.maximumf %18, %19 : vector<128x128xf32>
      %21 = arith.truncf %20 : vector<128x128xf32> to vector<128x128xbf16>
      %c0_14 = arith.constant 0 : index
      %c0_15 = arith.constant 0 : index
      %22 = vector.load %arg5[%c0_14, %c0_15] : memref<128x128xbf16, #tpu.memory_space<vmem>>, vector<128x128xbf16>
      tpu.vector_store %arg5[%c0_14, %c0_15], %21 {strides = array<i32>} : memref<128x128xbf16, #tpu.memory_space<vmem>>, vector<128x128xbf16>,
    } else {
    }
    return
  }
  func.func @transform_0(%arg0: i32, %arg1: i32) -> (i32, i32) {
    %c0_i32 = arith.constant 0 : i32
    return %arg0, %arg1 : i32, i32
  }
  func.func @transform_1(%arg0: i32, %arg1: i32) -> (i32, i32) {
    %c0_i32 = arith.constant 0 : i32
    %c0_i32_0 = arith.constant 0 : i32
    %c0_i32_1 = arith.constant 0 : i32
    return %c0_i32, %c0_i32_0 : i32, i32
  }
  func.func @transform_2(%arg0: i32, %arg1: i32) -> (i32, i32) {
    %c0_i32 = arith.constant 0 : i32
    %c0_i32_0 = arith.constant 0 : i32
    %c0_i32_1 = arith.constant 0 : i32
    return %c0_i32, %c0_i32_0 : i32, i32
  }
  func.func @transform_3(%arg0: i32, %arg1: i32) -> (i32, i32) {
    %c0_i32 = arith.constant 0 : i32
    %c0_i32_0 = arith.constant 0 : i32
    return %arg0, %c0_i32 : i32, i32
  }
}

</mosaic_0001>

<llo_original>
// kernel: gcn_forward.7
$region0: #{gcn_forward.7}
  #allocation0 [shape = 'u32[]', space=smem, size = 0x4, offset = 0x4, fixed_abs, tag = 'smem constant byte address 0x4 - core index']
  #allocation1 [shape = 'u32[144,128]{1,0:T(1,128)}', space=vmem, size = 0x12000, scoped, tag = 'internal scratch']
  #allocation2 [shape = 'f32[128,128]{1,0:T(8,128)}', space=vmem, size = 0x10000, scoped, tag = 'scratch operand']
  %s0 = inlined_call_operand.vmem [shape: bf16[128,128], index: 0, kind: input, shape index: {}]
  %s1 = inlined_call_operand.vmem [shape: bf16[128,128], index: 1, kind: input, shape index: {}]
  %s2 = inlined_call_operand.vmem [shape: f32[1,128], index: 2, kind: input, shape index: {}]
  %s3 = inlined_call_operand.vmem [shape: f32[128,128], index: 3, kind: output, shape index: {}]
  %s4 = sld [smem:[#allocation0]]
  $region30: #{gcn_forward.7} parent=0
    _
  %s6 = ssub.s32 1, %s4
  %s7 = scalar_select 0, %s6, %s4
  // Predicated region
  $region2: #{gcn_forward.7} parent=0 // pred_check
    _
  $region3: #{gcn_forward.7} parent=0 // pred_check_branch
    %9 = sbr.rel (0) target = $region5
  $region4: #{gcn_forward.7} parent=0 // pred_region
    _
  $region5: #{gcn_forward.7} parent=0 // pred_fallthru
    _
  // Predicated region
  $region6: #{gcn_forward.7} parent=0 // pred_check
    _
  $region7: #{gcn_forward.7} parent=0 // pred_check_branch
    %11 = sbr.rel (0) target = $region9
  $region8: #{gcn_forward.7} parent=0 // pred_region
    _
  $region9: #{gcn_forward.7} parent=0 // pred_fallthru
    _
  // Predicated region
  $region10: #{gcn_forward.7} parent=0 // pred_check
    _
  $region11: #{gcn_forward.7} parent=0 // pred_check_branch
    %13 = sbr.rel (0) target = $region13
  $region12: #{gcn_forward.7} parent=0 // pred_region
    _
  $region13: #{gcn_forward.7} parent=0 // pred_fallthru
    _
  %p15 = scmp.eq.s32.totalorder 0, 0
  // Predicated region
  $region14: #{gcn_forward.7} parent=0 // pred_check
    %p16 = pneg %p15
  $region15: #{gcn_forward.7} parent=0 // pred_check_branch
    %18 = sbr.rel (%p16) target = $region17
  $region16: #{gcn_forward.7} parent=0 // pred_region
    %19 = vst [vmem:[#allocation2] sm:$0xff] 0.0
    %20 = vst [vmem:[#allocation2 + $0x8] sm:$0xff] 0.0
    %21 = vst [vmem:[#allocation2 + $0x10] sm:$0xff] 0.0
    %22 = vst [vmem:[#allocation2 + $0x18] sm:$0xff] 0.0
    %23 = vst [vmem:[#allocation2 + $0x20] sm:$0xff] 0.0
    %24 = vst [vmem:[#allocation2 + $0x28] sm:$0xff] 0.0
    %25 = vst [vmem:[#allocation2 + $0x30] sm:$0xff] 0.0
    %26 = vst [vmem:[#allocation2 + $0x38] sm:$0xff] 0.0
    %27 = vst [vmem:[#allocation2 + $0x40] sm:$0xff] 0.0
    %28 = vst [vmem:[#allocation2 + $0x48] sm:$0xff] 0.0
    %29 = vst [vmem:[#allocation2 + $0x50] sm:$0xff] 0.0
    %30 = vst [vmem:[#allocation2 + $0x58] sm:$0xff] 0.0
    %31 = vst [vmem:[#allocation2 + $0x60] sm:$0xff] 0.0
    %32 = vst [vmem:[#allocation2 + $0x68] sm:$0xff] 0.0
    %33 = vst [vmem:[#allocation2 + $0x70] sm:$0xff] 0.0
    %34 = vst [vmem:[#allocation2 + $0x78] sm:$0xff] 0.0
  $region17: #{gcn_forward.7} parent=0 // pred_fallthru
    _
  %s35 = smul.u32 0, 128
  %v36 = vld [vmem:[#allocation2] sm:$0xff]
  %v37 = vld [vmem:[#allocation2 + $0x8] sm:$0xff]
  %v38 = vld [vmem:[#allocation2 + $0x10] sm:$0xff]
  %v39 = vld [vmem:[#allocation2 + $0x18] sm:$0xff]
  %v40 = vld [vmem:[#allocation2 + $0x20] sm:$0xff]
  %v41 = vld [vmem:[#allocation2 + $0x28] sm:$0xff]
  %v42 = vld [vmem:[#allocation2 + $0x30] sm:$0xff]
  %v43 = vld [vmem:[#allocation2 + $0x38] sm:$0xff]
  %v44 = vld [vmem:[#allocation2 + $0x40] sm:$0xff]
  %v45 = vld [vmem:[#allocation2 + $0x48] sm:$0xff]
  %v46 = vld [vmem:[#allocation2 + $0x50] sm:$0xff]
  %v47 = vld [vmem:[#allocation2 + $0x58] sm:$0xff]
  %v48 = vld [vmem:[#allocation2 + $0x60] sm:$0xff]
  %v49 = vld [vmem:[#allocation2 + $0x68] sm:$0xff]
  %v50 = vld [vmem:[#allocation2 + $0x70] sm:$0xff]
  %v51 = vld [vmem:[#allocation2 + $0x78] sm:$0xff]
  %v52 = vld [vmem:[%s0] sm:$0xf]
  %v53 = vld [vmem:[%s0 + $0x4] sm:$0xf]
  %v54 = vld [vmem:[%s0 + $0x8] sm:$0xf]
  %v55 = vld [vmem:[%s0 + $0xc] sm:$0xf]
  %v56 = vld [vmem:[%s0 + $0x10] sm:$0xf]
  %v57 = vld [vmem:[%s0 + $0x14] sm:$0xf]
  %v58 = vld [vmem:[%s0 + $0x18] sm:$0xf]
  %v59 = vld [vmem:[%s0 + $0x1c] sm:$0xf]
  %v60 = vld [vmem:[%s0 + $0x20] sm:$0xf]
  %v61 = vld [vmem:[%s0 + $0x24] sm:$0xf]
  %v62 = vld [vmem:[%s0 + $0x28] sm:$0xf]
  %v63 = vld [vmem:[%s0 + $0x2c] sm:$0xf]
  %v64 = vld [vmem:[%s0 + $0x30] sm:$0xf]
  %v65 = vld [vmem:[%s0 + $0x34] sm:$0xf]
  %v66 = vld [vmem:[%s0 + $0x38] sm:$0xf]
  %v67 = vld [vmem:[%s0 + $0x3c] sm:$0xf]
  %s68 = sshra.s32 %s35, 3
  %s69 = sand.u32 %s35, 7
  %s70 = smul.addr %s68, 4
  %s71 = scalar_lea.vmem %s1, %s70
  %v72 = vld [vmem:[%s71] sm:$0xf]
  %v73 = vld [vmem:[%s71 + $0x4] sm:$0xf]
  %v74 = vld [vmem:[%s71 + $0x8] sm:$0xf]
  %v75 = vld [vmem:[%s71 + $0xc] sm:$0xf]
  %v76 = vld [vmem:[%s71 + $0x10] sm:$0xf]
  %v77 = vld [vmem:[%s71 + $0x14] sm:$0xf]
  %v78 = vld [vmem:[%s71 + $0x18] sm:$0xf]
  %v79 = vld [vmem:[%s71 + $0x1c] sm:$0xf]
  %v80 = vld [vmem:[%s71 + $0x20] sm:$0xf]
  %v81 = vld [vmem:[%s71 + $0x24] sm:$0xf]
  %v82 = vld [vmem:[%s71 + $0x28] sm:$0xf]
  %v83 = vld [vmem:[%s71 + $0x2c] sm:$0xf]
  %v84 = vld [vmem:[%s71 + $0x30] sm:$0xf]
  %v85 = vld [vmem:[%s71 + $0x34] sm:$0xf]
  %v86 = vld [vmem:[%s71 + $0x38] sm:$0xf]
  %v87 = vld [vmem:[%s71 + $0x3c] sm:$0xf]
  %v104 = vunpack.c.l.b16 %v52
  %v105 = vunpack.c.l.b16 %v53
  %v106 = vunpack.c.l.b16 %v54
  %v107 = vunpack.c.l.b16 %v55
  %v108 = vunpack.c.l.b16 %v56
  %v109 = vunpack.c.l.b16 %v57
  %v110 = vunpack.c.l.b16 %v58
  %v111 = vunpack.c.l.b16 %v59
  %v112 = vunpack.c.l.b16 %v60
  %v113 = vunpack.c.l.b16 %v61
  %v114 = vunpack.c.l.b16 %v62
  %v115 = vunpack.c.l.b16 %v63
  %v116 = vunpack.c.l.b16 %v64
  %v117 = vunpack.c.l.b16 %v65
  %v118 = vunpack.c.l.b16 %v66
  %v119 = vunpack.c.l.b16 %v67
  %v120 = vpack.c.b16 %v105, %v104
  %v121 = vpack.c.b16 %v107, %v106
  %v122 = vpack.c.b16 %v109, %v108
  %v123 = vpack.c.b16 %v111, %v110
  %v124 = vpack.c.b16 %v113, %v112
  %v125 = vpack.c.b16 %v115, %v114
  %v126 = vpack.c.b16 %v117, %v116
  %v127 = vpack.c.b16 %v119, %v118
  %v152 = vunpack.c.l.b16 %v72
  %v153 = vunpack.c.l.b16 %v73
  %v154 = vunpack.c.l.b16 %v74
  %v155 = vunpack.c.l.b16 %v75
  %v156 = vunpack.c.l.b16 %v76
  %v157 = vunpack.c.l.b16 %v77
  %v158 = vunpack.c.l.b16 %v78
  %v159 = vunpack.c.l.b16 %v79
  %v160 = vunpack.c.l.b16 %v80
  %v161 = vunpack.c.l.b16 %v81
  %v162 = vunpack.c.l.b16 %v82
  %v163 = vunpack.c.l.b16 %v83
  %v164 = vunpack.c.l.b16 %v84
  %v165 = vunpack.c.l.b16 %v85
  %v166 = vunpack.c.l.b16 %v86
  %v167 = vunpack.c.l.b16 %v87
  %v168 = vpack.c.b16 %v153, %v152
  %v169 = vpack.c.b16 %v155, %v154
  %v170 = vpack.c.b16 %v157, %v156
  %v171 = vpack.c.b16 %v159, %v158
  %v172 = vpack.c.b16 %v161, %v160
  %v173 = vpack.c.b16 %v163, %v162
  %v174 = vpack.c.b16 %v165, %v164
  %v175 = vpack.c.b16 %v167, %v166
  %184 = vmatprep.subr.bf16.mxu0 0
  %185 = vmatpush1.bf16.msra.mxu0 %v175
  %186 = vmatprep.subr.bf16.mxu0 0
  %187 = vmatpush1.bf16.msra.mxu0 %v174
  %188 = vmatprep.subr.bf16.mxu0 0
  %189 = vmatpush1.bf16.msra.mxu0 %v173
  %190 = vmatprep.subr.bf16.mxu0 0
  %191 = vmatpush1.bf16.msra.mxu0 %v172
  %192 = vmatprep.subr.bf16.mxu0 0
  %193 = vmatpush1.bf16.msra.mxu0 %v171
  %194 = vmatprep.subr.bf16.mxu0 0
  %195 = vmatpush1.bf16.msra.mxu0 %v170
  %196 = vmatprep.subr.bf16.mxu0 0
  %197 = vmatpush1.bf16.msra.mxu0 %v169
  %198 = vmatprep.subr.bf16.mxu0 0
  %199 = vmatpush1.bf16.msra.mxu0 %v168
  %200 = vmatprep.subr.bf16.mxu0 0
  %201 = vmatpush2.bf16.msra.mxu0 0
  %202 = vmatprep.subr.bf16.mxu0 0
  %203 = vmatpush2.bf16.msra.mxu0 0
  %204 = vmatprep.subr.bf16.mxu0 0
  %205 = vmatpush2.bf16.msra.mxu0 0
  %206 = vmatprep.subr.bf16.mxu0 0
  %207 = vmatpush2.bf16.msra.mxu0 0
  %208 = vmatprep.subr.bf16.mxu0 0
  %209 = vmatpush2.bf16.msra.mxu0 0
  %210 = vmatprep.subr.bf16.mxu0 0
  %211 = vmatpush2.bf16.msra.mxu0 0
  %212 = vmatprep.subr.bf16.mxu0 0
  %213 = vmatpush2.bf16.msra.mxu0 0
  %214 = vmatprep.subr.bf16.mxu0 0
  %215 = vmatpush2.bf16.msra.mxu0 0
  %216 = vmatprep.mubr.bf16.mxu0 0
  %217 = vmatmul.mubr.bf16.gmra.mxu0 %v120
  %v218 = vpop.f32.mrf.mxu0
  %v219 = vadd.f32 0.0, %v218
  %v220 = vpop.f32.mrf.mxu0
  %v221 = vpop.f32.mrf.mxu0
  %v222 = vadd.f32 0.0, %v221
  %v223 = vpop.f32.mrf.mxu0
  %224 = vmatprep.mubr.bf16.mxu0 0
  %225 = vmatmul.mubr.bf16.gmra.mxu0 %v121
  %v226 = vpop.f32.mrf.mxu0
  %v227 = vadd.f32 0.0, %v226
  %v228 = vpop.f32.mrf.mxu0
  %v229 = vpop.f32.mrf.mxu0
  %v230 = vadd.f32 0.0, %v229
  %v231 = vpop.f32.mrf.mxu0
  %232 = vmatprep.mubr.bf16.mxu0 0
  %233 = vmatmul.mubr.bf16.gmra.mxu0 %v122
  %v234 = vpop.f32.mrf.mxu0
  %v235 = vadd.f32 0.0, %v234
  %v236 = vpop.f32.mrf.mxu0
  %v237 = vpop.f32.mrf.mxu0
  %v238 = vadd.f32 0.0, %v237
  %v239 = vpop.f32.mrf.mxu0
  %240 = vmatprep.mubr.bf16.mxu0 0
  %241 = vmatmul.mubr.bf16.gmra.mxu0 %v123
  %v242 = vpop.f32.mrf.mxu0
  %v243 = vadd.f32 0.0, %v242
  %v244 = vpop.f32.mrf.mxu0
  %v245 = vpop.f32.mrf.mxu0
  %v246 = vadd.f32 0.0, %v245
  %v247 = vpop.f32.mrf.mxu0
  %248 = vmatprep.mubr.bf16.mxu0 0
  %249 = vmatmul.mubr.bf16.gmra.mxu0 %v124
  %v250 = vpop.f32.mrf.mxu0
  %v251 = vadd.f32 0.0, %v250
  %v252 = vpop.f32.mrf.mxu0
  %v253 = vpop.f32.mrf.mxu0
  %v254 = vadd.f32 0.0, %v253
  %v255 = vpop.f32.mrf.mxu0
  %256 = vmatprep.mubr.bf16.mxu0 0
  %257 = vmatmul.mubr.bf16.gmra.mxu0 %v125
  %v258 = vpop.f32.mrf.mxu0
  %v259 = vadd.f32 0.0, %v258
  %v260 = vpop.f32.mrf.mxu0
  %v261 = vpop.f32.mrf.mxu0
  %v262 = vadd.f32 0.0, %v261
  %v263 = vpop.f32.mrf.mxu0
  %264 = vmatprep.mubr.bf16.mxu0 0
  %265 = vmatmul.mubr.bf16.gmra.mxu0 %v126
  %v266 = vpop.f32.mrf.mxu0
  %v267 = vadd.f32 0.0, %v266
  %v268 = vpop.f32.mrf.mxu0
  %v269 = vpop.f32.mrf.mxu0
  %v270 = vadd.f32 0.0, %v269
  %v271 = vpop.f32.mrf.mxu0
  %272 = vmatprep.mubr.bf16.mxu0 0
  %273 = vmatmul.mubr.bf16.gmra.mxu0 %v127
  %v274 = vpop.f32.mrf.mxu0
  %v275 = vadd.f32 0.0, %v274
  %v276 = vpop.f32.mrf.mxu0
  %v277 = vpop.f32.mrf.mxu0
  %v278 = vadd.f32 0.0, %v277
  %v279 = vpop.f32.mrf.mxu0
  %280 = vdwg.mxu0
  %v281 = vadd.f32 %v36, %v219
  %v282 = vadd.f32 %v37, %v222
  %v283 = vadd.f32 %v38, %v227
  %v284 = vadd.f32 %v39, %v230
  %v285 = vadd.f32 %v40, %v235
  %v286 = vadd.f32 %v41, %v238
  %v287 = vadd.f32 %v42, %v243
  %v288 = vadd.f32 %v43, %v246
  %v289 = vadd.f32 %v44, %v251
  %v290 = vadd.f32 %v45, %v254
  %v291 = vadd.f32 %v46, %v259
  %v292 = vadd.f32 %v47, %v262
  %v293 = vadd.f32 %v48, %v267
  %v294 = vadd.f32 %v49, %v270
  %v295 = vadd.f32 %v50, %v275
  %v296 = vadd.f32 %v51, %v278
  %297 = vst [vmem:[#allocation2] sm:$0xff] %v281
  %298 = vst [vmem:[#allocation2 + $0x8] sm:$0xff] %v282
  %299 = vst [vmem:[#allocation2 + $0x10] sm:$0xff] %v283
  %300 = vst [vmem:[#allocation2 + $0x18] sm:$0xff] %v284
  %301 = vst [vmem:[#allocation2 + $0x20] sm:$0xff] %v285
  %302 = vst [vmem:[#allocation2 + $0x28] sm:$0xff] %v286
  %303 = vst [vmem:[#allocation2 + $0x30] sm:$0xff] %v287
  %304 = vst [vmem:[#allocation2 + $0x38] sm:$0xff] %v288
  %305 = vst [vmem:[#allocation2 + $0x40] sm:$0xff] %v289
  %306 = vst [vmem:[#allocation2 + $0x48] sm:$0xff] %v290
  %307 = vst [vmem:[#allocation2 + $0x50] sm:$0xff] %v291
  %308 = vst [vmem:[#allocation2 + $0x58] sm:$0xff] %v292
  %309 = vst [vmem:[#allocation2 + $0x60] sm:$0xff] %v293
  %310 = vst [vmem:[#allocation2 + $0x68] sm:$0xff] %v294
  %311 = vst [vmem:[#allocation2 + $0x70] sm:$0xff] %v295
  %312 = vst [vmem:[#allocation2 + $0x78] sm:$0xff] %v296
  // Predicated region
  $region18: #{gcn_forward.7} parent=0 // pred_check
    %p313 = pneg %p15
  $region19: #{gcn_forward.7} parent=0 // pred_check_branch
    %315 = sbr.rel (%p313) target = $region21
  $region20: #{gcn_forward.7} parent=0 // pred_region
    %v316 = vld [vmem:[#allocation2] sm:$0xff]
    %v317 = vld [vmem:[#allocation2 + $0x8] sm:$0xff]
    %v318 = vld [vmem:[#allocation2 + $0x10] sm:$0xff]
    %v319 = vld [vmem:[#allocation2 + $0x18] sm:$0xff]
    %v320 = vld [vmem:[#allocation2 + $0x20] sm:$0xff]
    %v321 = vld [vmem:[#allocation2 + $0x28] sm:$0xff]
    %v322 = vld [vmem:[#allocation2 + $0x30] sm:$0xff]
    %v323 = vld [vmem:[#allocation2 + $0x38] sm:$0xff]
    %v324 = vld [vmem:[#allocation2 + $0x40] sm:$0xff]
    %v325 = vld [vmem:[#allocation2 + $0x48] sm:$0xff]
    %v326 = vld [vmem:[#allocation2 + $0x50] sm:$0xff]
    %v327 = vld [vmem:[#allocation2 + $0x58] sm:$0xff]
    %v328 = vld [vmem:[#allocation2 + $0x60] sm:$0xff]
    %v329 = vld [vmem:[#allocation2 + $0x68] sm:$0xff]
    %v330 = vld [vmem:[#allocation2 + $0x70] sm:$0xff]
    %v331 = vld [vmem:[#allocation2 + $0x78] sm:$0xff]
    %v332 = vld [vmem:[%s2] sm:$0x1]
    %v334 = vlaneseq
    %v335 = vshrl.u32 %v334, 7
    %v336 = vsub.s32 0, %v335
    %v337 = vrot.slane %v332, %v336
    %v339 = vadd.f32 %v316, %v337
    %v340 = vadd.f32 %v317, %v337
    %v341 = vadd.f32 %v318, %v337
    %v342 = vadd.f32 %v319, %v337
    %v343 = vadd.f32 %v320, %v337
    %v344 = vadd.f32 %v321, %v337
    %v345 = vadd.f32 %v322, %v337
    %v346 = vadd.f32 %v323, %v337
    %v347 = vadd.f32 %v324, %v337
    %v348 = vadd.f32 %v325, %v337
    %v349 = vadd.f32 %v326, %v337
    %v350 = vadd.f32 %v327, %v337
    %v351 = vadd.f32 %v328, %v337
    %v352 = vadd.f32 %v329, %v337
    %v353 = vadd.f32 %v330, %v337
    %v354 = vadd.f32 %v331, %v337
    %355 = vst [vmem:[%s3] sm:$0xff] %v339
    %356 = vst [vmem:[%s3 + $0x8] sm:$0xff] %v340
    %357 = vst [vmem:[%s3 + $0x10] sm:$0xff] %v341
    %358 = vst [vmem:[%s3 + $0x18] sm:$0xff] %v342
    %359 = vst [vmem:[%s3 + $0x20] sm:$0xff] %v343
    %360 = vst [vmem:[%s3 + $0x28] sm:$0xff] %v344
    %361 = vst [vmem:[%s3 + $0x30] sm:$0xff] %v345
    %362 = vst [vmem:[%s3 + $0x38] sm:$0xff] %v346
    %363 = vst [vmem:[%s3 + $0x40] sm:$0xff] %v347
    %364 = vst [vmem:[%s3 + $0x48] sm:$0xff] %v348
    %365 = vst [vmem:[%s3 + $0x50] sm:$0xff] %v349
    %366 = vst [vmem:[%s3 + $0x58] sm:$0xff] %v350
    %367 = vst [vmem:[%s3 + $0x60] sm:$0xff] %v351
    %368 = vst [vmem:[%s3 + $0x68] sm:$0xff] %v352
    %369 = vst [vmem:[%s3 + $0x70] sm:$0xff] %v353
    %370 = vst [vmem:[%s3 + $0x78] sm:$0xff] %v354
  $region21: #{gcn_forward.7} parent=0 // pred_fallthru
    _
  // Predicated region
  $region22: #{gcn_forward.7} parent=0 // pred_check
    _
  $region23: #{gcn_forward.7} parent=0 // pred_check_branch
    %372 = sbr.rel (0) target = $region25
  $region24: #{gcn_forward.7} parent=0 // pred_region
    _
  $region25: #{gcn_forward.7} parent=0 // pred_fallthru
    _
  // Predicated region
  $region26: #{gcn_forward.7} parent=0 // pred_check
    _
  $region27: #{gcn_forward.7} parent=0 // pred_check_branch
    %374 = sbr.rel (0) target = $region29
  $region28: #{gcn_forward.7} parent=0 // pred_region
    _
  $region29: #{gcn_forward.7} parent=0 // pred_fallthru
    _

// kernel: gcn_forward.4
$region0: #{gcn_forward.4}
  #allocation0 [shape = 'u32[]', space=smem, size = 0x4, offset = 0x4, fixed_abs, tag = 'smem constant byte address 0x4 - core index']
  #allocation1 [shape = 'u32[144,128]{1,0:T(1,128)}', space=vmem, size = 0x12000, scoped, tag = 'internal scratch']
  %s0 = inlined_call_operand.vmem [shape: bf16[128,128], index: 0, kind: input, shape index: {}]
  %s1 = inlined_call_operand.vmem [shape: bf16[128,128], index: 1, kind: input, shape index: {}]
  %s2 = inlined_call_operand.vmem [shape: bf16[128,128], index: 2, kind: output, shape index: {}]
  %s3 = sld [smem:[#allocation0]]
  $region18: #{gcn_forward.4} parent=0
    _
  %s5 = ssub.s32 1, %s3
  %s6 = scalar_select 0, %s5, %s3
  // Predicated region
  $region2: #{gcn_forward.4} parent=0 // pred_check
    _
  $region3: #{gcn_forward.4} parent=0 // pred_check_branch
    %8 = sbr.rel (0) target = $region5
  $region4: #{gcn_forward.4} parent=0 // pred_region
    _
  $region5: #{gcn_forward.4} parent=0 // pred_fallthru
    _
  // Predicated region
  $region6: #{gcn_forward.4} parent=0 // pred_check
    _
  $region7: #{gcn_forward.4} parent=0 // pred_check_branch
    %10 = sbr.rel (0) target = $region9
  $region8: #{gcn_forward.4} parent=0 // pred_region
    _
  $region9: #{gcn_forward.4} parent=0 // pred_fallthru
    _
  %v12 = vld [vmem:[%s0] sm:$0xf]
  %v13 = vld [vmem:[%s0 + $0x4] sm:$0xf]
  %v14 = vld [vmem:[%s0 + $0x8] sm:$0xf]
  %v15 = vld [vmem:[%s0 + $0xc] sm:$0xf]
  %v16 = vld [vmem:[%s0 + $0x10] sm:$0xf]
  %v17 = vld [vmem:[%s0 + $0x14] sm:$0xf]
  %v18 = vld [vmem:[%s0 + $0x18] sm:$0xf]
  %v19 = vld [vmem:[%s0 + $0x1c] sm:$0xf]
  %v20 = vld [vmem:[%s0 + $0x20] sm:$0xf]
  %v21 = vld [vmem:[%s0 + $0x24] sm:$0xf]
  %v22 = vld [vmem:[%s0 + $0x28] sm:$0xf]
  %v23 = vld [vmem:[%s0 + $0x2c] sm:$0xf]
  %v24 = vld [vmem:[%s0 + $0x30] sm:$0xf]
  %v25 = vld [vmem:[%s0 + $0x34] sm:$0xf]
  %v26 = vld [vmem:[%s0 + $0x38] sm:$0xf]
  %v27 = vld [vmem:[%s0 + $0x3c] sm:$0xf]
  %v28 = vld [vmem:[%s1] sm:$0xf]
  %v29 = vld [vmem:[%s1 + $0x4] sm:$0xf]
  %v30 = vld [vmem:[%s1 + $0x8] sm:$0xf]
  %v31 = vld [vmem:[%s1 + $0xc] sm:$0xf]
  %v32 = vld [vmem:[%s1 + $0x10] sm:$0xf]
  %v33 = vld [vmem:[%s1 + $0x14] sm:$0xf]
  %v34 = vld [vmem:[%s1 + $0x18] sm:$0xf]
  %v35 = vld [vmem:[%s1 + $0x1c] sm:$0xf]
  %v36 = vld [vmem:[%s1 + $0x20] sm:$0xf]
  %v37 = vld [vmem:[%s1 + $0x24] sm:$0xf]
  %v38 = vld [vmem:[%s1 + $0x28] sm:$0xf]
  %v39 = vld [vmem:[%s1 + $0x2c] sm:$0xf]
  %v40 = vld [vmem:[%s1 + $0x30] sm:$0xf]
  %v41 = vld [vmem:[%s1 + $0x34] sm:$0xf]
  %v42 = vld [vmem:[%s1 + $0x38] sm:$0xf]
  %v43 = vld [vmem:[%s1 + $0x3c] sm:$0xf]
  %v60 = vunpack.c.l.b16 %v12
  %v61 = vunpack.c.l.b16 %v13
  %v62 = vunpack.c.l.b16 %v14
  %v63 = vunpack.c.l.b16 %v15
  %v64 = vunpack.c.l.b16 %v16
  %v65 = vunpack.c.l.b16 %v17
  %v66 = vunpack.c.l.b16 %v18
  %v67 = vunpack.c.l.b16 %v19
  %v68 = vunpack.c.l.b16 %v20
  %v69 = vunpack.c.l.b16 %v21
  %v70 = vunpack.c.l.b16 %v22
  %v71 = vunpack.c.l.b16 %v23
  %v72 = vunpack.c.l.b16 %v24
  %v73 = vunpack.c.l.b16 %v25
  %v74 = vunpack.c.l.b16 %v26
  %v75 = vunpack.c.l.b16 %v27
  %v76 = vpack.c.b16 %v61, %v60
  %v77 = vpack.c.b16 %v63, %v62
  %v78 = vpack.c.b16 %v65, %v64
  %v79 = vpack.c.b16 %v67, %v66
  %v80 = vpack.c.b16 %v69, %v68
  %v81 = vpack.c.b16 %v71, %v70
  %v82 = vpack.c.b16 %v73, %v72
  %v83 = vpack.c.b16 %v75, %v74
  %v108 = vunpack.c.l.b16 %v28
  %v109 = vunpack.c.l.b16 %v29
  %v110 = vunpack.c.l.b16 %v30
  %v111 = vunpack.c.l.b16 %v31
  %v112 = vunpack.c.l.b16 %v32
  %v113 = vunpack.c.l.b16 %v33
  %v114 = vunpack.c.l.b16 %v34
  %v115 = vunpack.c.l.b16 %v35
  %v116 = vunpack.c.l.b16 %v36
  %v117 = vunpack.c.l.b16 %v37
  %v118 = vunpack.c.l.b16 %v38
  %v119 = vunpack.c.l.b16 %v39
  %v120 = vunpack.c.l.b16 %v40
  %v121 = vunpack.c.l.b16 %v41
  %v122 = vunpack.c.l.b16 %v42
  %v123 = vunpack.c.l.b16 %v43
  %v124 = vpack.c.b16 %v109, %v108
  %v125 = vpack.c.b16 %v111, %v110
  %v126 = vpack.c.b16 %v113, %v112
  %v127 = vpack.c.b16 %v115, %v114
  %v128 = vpack.c.b16 %v117, %v116
  %v129 = vpack.c.b16 %v119, %v118
  %v130 = vpack.c.b16 %v121, %v120
  %v131 = vpack.c.b16 %v123, %v122
  %140 = vmatprep.subr.bf16.mxu0 0
  %141 = vmatpush1.bf16.msra.mxu0 %v131
  %142 = vmatprep.subr.bf16.mxu0 0
  %143 = vmatpush1.bf16.msra.mxu0 %v130
  %144 = vmatprep.subr.bf16.mxu0 0
  %145 = vmatpush1.bf16.msra.mxu0 %v129
  %146 = vmatprep.subr.bf16.mxu0 0
  %147 = vmatpush1.bf16.msra.mxu0 %v128
  %148 = vmatprep.subr.bf16.mxu0 0
  %149 = vmatpush1.bf16.msra.mxu0 %v127
  %150 = vmatprep.subr.bf16.mxu0 0
  %151 = vmatpush1.bf16.msra.mxu0 %v126
  %152 = vmatprep.subr.bf16.mxu0 0
  %153 = vmatpush1.bf16.msra.mxu0 %v125
  %154 = vmatprep.subr.bf16.mxu0 0
  %155 = vmatpush1.bf16.msra.mxu0 %v124
  %156 = vmatprep.subr.bf16.mxu0 0
  %157 = vmatpush2.bf16.msra.mxu0 0
  %158 = vmatprep.subr.bf16.mxu0 0
  %159 = vmatpush2.bf16.msra.mxu0 0
  %160 = vmatprep.subr.bf16.mxu0 0
  %161 = vmatpush2.bf16.msra.mxu0 0
  %162 = vmatprep.subr.bf16.mxu0 0
  %163 = vmatpush2.bf16.msra.mxu0 0
  %164 = vmatprep.subr.bf16.mxu0 0
  %165 = vmatpush2.bf16.msra.mxu0 0
  %166 = vmatprep.subr.bf16.mxu0 0
  %167 = vmatpush2.bf16.msra.mxu0 0
  %168 = vmatprep.subr.bf16.mxu0 0
  %169 = vmatpush2.bf16.msra.mxu0 0
  %170 = vmatprep.subr.bf16.mxu0 0
  %171 = vmatpush2.bf16.msra.mxu0 0
  %172 = vmatprep.mubr.bf16.mxu0 0
  %173 = vmatmul.mubr.bf16.gmra.mxu0 %v76
  %v174 = vpop.f32.mrf.mxu0
  %v175 = vadd.f32 0.0, %v174
  %v176 = vpop.f32.mrf.mxu0
  %v177 = vpop.f32.mrf.mxu0
  %v178 = vadd.f32 0.0, %v177
  %v179 = vpop.f32.mrf.mxu0
  %180 = vmatprep.mubr.bf16.mxu0 0
  %181 = vmatmul.mubr.bf16.gmra.mxu0 %v77
  %v182 = vpop.f32.mrf.mxu0
  %v183 = vadd.f32 0.0, %v182
  %v184 = vpop.f32.mrf.mxu0
  %v185 = vpop.f32.mrf.mxu0
  %v186 = vadd.f32 0.0, %v185
  %v187 = vpop.f32.mrf.mxu0
  %188 = vmatprep.mubr.bf16.mxu0 0
  %189 = vmatmul.mubr.bf16.gmra.mxu0 %v78
  %v190 = vpop.f32.mrf.mxu0
  %v191 = vadd.f32 0.0, %v190
  %v192 = vpop.f32.mrf.mxu0
  %v193 = vpop.f32.mrf.mxu0
  %v194 = vadd.f32 0.0, %v193
  %v195 = vpop.f32.mrf.mxu0
  %196 = vmatprep.mubr.bf16.mxu0 0
  %197 = vmatmul.mubr.bf16.gmra.mxu0 %v79
  %v198 = vpop.f32.mrf.mxu0
  %v199 = vadd.f32 0.0, %v198
  %v200 = vpop.f32.mrf.mxu0
  %v201 = vpop.f32.mrf.mxu0
  %v202 = vadd.f32 0.0, %v201
  %v203 = vpop.f32.mrf.mxu0
  %204 = vmatprep.mubr.bf16.mxu0 0
  %205 = vmatmul.mubr.bf16.gmra.mxu0 %v80
  %v206 = vpop.f32.mrf.mxu0
  %v207 = vadd.f32 0.0, %v206
  %v208 = vpop.f32.mrf.mxu0
  %v209 = vpop.f32.mrf.mxu0
  %v210 = vadd.f32 0.0, %v209
  %v211 = vpop.f32.mrf.mxu0
  %212 = vmatprep.mubr.bf16.mxu0 0
  %213 = vmatmul.mubr.bf16.gmra.mxu0 %v81
  %v214 = vpop.f32.mrf.mxu0
  %v215 = vadd.f32 0.0, %v214
  %v216 = vpop.f32.mrf.mxu0
  %v217 = vpop.f32.mrf.mxu0
  %v218 = vadd.f32 0.0, %v217
  %v219 = vpop.f32.mrf.mxu0
  %220 = vmatprep.mubr.bf16.mxu0 0
  %221 = vmatmul.mubr.bf16.gmra.mxu0 %v82
  %v222 = vpop.f32.mrf.mxu0
  %v223 = vadd.f32 0.0, %v222
  %v224 = vpop.f32.mrf.mxu0
  %v225 = vpop.f32.mrf.mxu0
  %v226 = vadd.f32 0.0, %v225
  %v227 = vpop.f32.mrf.mxu0
  %228 = vmatprep.mubr.bf16.mxu0 0
  %229 = vmatmul.mubr.bf16.gmra.mxu0 %v83
  %v230 = vpop.f32.mrf.mxu0
  %v231 = vadd.f32 0.0, %v230
  %v232 = vpop.f32.mrf.mxu0
  %v233 = vpop.f32.mrf.mxu0
  %v234 = vadd.f32 0.0, %v233
  %v235 = vpop.f32.mrf.mxu0
  %236 = vdwg.mxu0
  %v237 = vpack.c.bf16 %v178, %v175
  %v238 = vpack.c.bf16 %v186, %v183
  %v239 = vpack.c.bf16 %v194, %v191
  %v240 = vpack.c.bf16 %v202, %v199
  %v241 = vpack.c.bf16 %v210, %v207
  %v242 = vpack.c.bf16 %v218, %v215
  %v243 = vpack.c.bf16 %v226, %v223
  %v244 = vpack.c.bf16 %v234, %v231
  %v253 = vunpack.c.l.b16 %v237
  %v254 = vunpack.c.h.b16 %v237
  %v255 = vunpack.c.l.b16 %v238
  %v256 = vunpack.c.h.b16 %v238
  %v257 = vunpack.c.l.b16 %v239
  %v258 = vunpack.c.h.b16 %v239
  %v259 = vunpack.c.l.b16 %v240
  %v260 = vunpack.c.h.b16 %v240
  %v261 = vunpack.c.l.b16 %v241
  %v262 = vunpack.c.h.b16 %v241
  %v263 = vunpack.c.l.b16 %v242
  %v264 = vunpack.c.h.b16 %v242
  %v265 = vunpack.c.l.b16 %v243
  %v266 = vunpack.c.h.b16 %v243
  %v267 = vunpack.c.l.b16 %v244
  %v268 = vunpack.c.h.b16 %v244
  %v269 = vpack.c.b16 %v253, %v253
  %v270 = vpack.c.b16 %v254, %v254
  %v271 = vpack.c.b16 %v255, %v255
  %v272 = vpack.c.b16 %v256, %v256
  %v273 = vpack.c.b16 %v257, %v257
  %v274 = vpack.c.b16 %v258, %v258
  %v275 = vpack.c.b16 %v259, %v259
  %v276 = vpack.c.b16 %v260, %v260
  %v277 = vpack.c.b16 %v261, %v261
  %v278 = vpack.c.b16 %v262, %v262
  %v279 = vpack.c.b16 %v263, %v263
  %v280 = vpack.c.b16 %v264, %v264
  %v281 = vpack.c.b16 %v265, %v265
  %v282 = vpack.c.b16 %v266, %v266
  %v283 = vpack.c.b16 %v267, %v267
  %v284 = vpack.c.b16 %v268, %v268
  %301 = vst [vmem:[%s2] sm:$0xf] %v269
  %302 = vst [vmem:[%s2 + $0x4] sm:$0xf] %v270
  %303 = vst [vmem:[%s2 + $0x8] sm:$0xf] %v271
  %304 = vst [vmem:[%s2 + $0xc] sm:$0xf] %v272
  %305 = vst [vmem:[%s2 + $0x10] sm:$0xf] %v273
  %306 = vst [vmem:[%s2 + $0x14] sm:$0xf] %v274
  %307 = vst [vmem:[%s2 + $0x18] sm:$0xf] %v275
  %308 = vst [vmem:[%s2 + $0x1c] sm:$0xf] %v276
  %309 = vst [vmem:[%s2 + $0x20] sm:$0xf] %v277
  %310 = vst [vmem:[%s2 + $0x24] sm:$0xf] %v278
  %311 = vst [vmem:[%s2 + $0x28] sm:$0xf] %v279
  %312 = vst [vmem:[%s2 + $0x2c] sm:$0xf] %v280
  %313 = vst [vmem:[%s2 + $0x30] sm:$0xf] %v281
  %314 = vst [vmem:[%s2 + $0x34] sm:$0xf] %v282
  %315 = vst [vmem:[%s2 + $0x38] sm:$0xf] %v283
  %316 = vst [vmem:[%s2 + $0x3c] sm:$0xf] %v284
  // Predicated region
  $region10: #{gcn_forward.4} parent=0 // pred_check
    _
  $region11: #{gcn_forward.4} parent=0 // pred_check_branch
    %318 = sbr.rel (0) target = $region13
  $region12: #{gcn_forward.4} parent=0 // pred_region
    _
  $region13: #{gcn_forward.4} parent=0 // pred_fallthru
    _
  // Predicated region
  $region14: #{gcn_forward.4} parent=0 // pred_check
    _
  $region15: #{gcn_forward.4} parent=0 // pred_check_branch
    %320 = sbr.rel (0) target = $region17
  $region16: #{gcn_forward.4} parent=0 // pred_region
    _
  $region17: #{gcn_forward.4} parent=0 // pred_fallthru
    _

// kernel: gcn_forward.5
$region0: #{gcn_forward.5}
  #allocation0 [shape = 'u32[]', space=smem, size = 0x4, offset = 0x4, fixed_abs, tag = 'smem constant byte address 0x4 - core index']
  #allocation1 [shape = 'u32[144,128]{1,0:T(1,128)}', space=vmem, size = 0x12000, scoped, tag = 'internal scratch']
  #allocation2 [shape = 'f32[128,128]{1,0:T(8,128)}', space=vmem, size = 0x10000, scoped, tag = 'scratch operand']
  %s0 = inlined_call_operand.vmem [shape: bf16[128,128], index: 0, kind: input, shape index: {}]
  %s1 = inlined_call_operand.vmem [shape: bf16[128,128], index: 1, kind: input, shape index: {}]
  %s2 = inlined_call_operand.vmem [shape: f32[1,128], index: 2, kind: input, shape index: {}]
  %s3 = inlined_call_operand.vmem [shape: bf16[128,128], index: 3, kind: output, shape index: {}]
  %s4 = sld [smem:[#allocation0]]
  $region30: #{gcn_forward.5} parent=0
    _
  %s6 = ssub.s32 1, %s4
  %s7 = scalar_select 0, %s6, %s4
  // Predicated region
  $region2: #{gcn_forward.5} parent=0 // pred_check
    _
  $region3: #{gcn_forward.5} parent=0 // pred_check_branch
    %9 = sbr.rel (0) target = $region5
  $region4: #{gcn_forward.5} parent=0 // pred_region
    _
  $region5: #{gcn_forward.5} parent=0 // pred_fallthru
    _
  // Predicated region
  $region6: #{gcn_forward.5} parent=0 // pred_check
    _
  $region7: #{gcn_forward.5} parent=0 // pred_check_branch
    %11 = sbr.rel (0) target = $region9
  $region8: #{gcn_forward.5} parent=0 // pred_region
    _
  $region9: #{gcn_forward.5} parent=0 // pred_fallthru
    _
  // Predicated region
  $region10: #{gcn_forward.5} parent=0 // pred_check
    _
  $region11: #{gcn_forward.5} parent=0 // pred_check_branch
    %13 = sbr.rel (0) target = $region13
  $region12: #{gcn_forward.5} parent=0 // pred_region
    _
  $region13: #{gcn_forward.5} parent=0 // pred_fallthru
    _
  %p15 = scmp.eq.s32.totalorder 0, 0
  // Predicated region
  $region14: #{gcn_forward.5} parent=0 // pred_check
    %p16 = pneg %p15
  $region15: #{gcn_forward.5} parent=0 // pred_check_branch
    %18 = sbr.rel (%p16) target = $region17
  $region16: #{gcn_forward.5} parent=0 // pred_region
    %19 = vst [vmem:[#allocation2] sm:$0xff] 0.0
    %20 = vst [vmem:[#allocation2 + $0x8] sm:$0xff] 0.0
    %21 = vst [vmem:[#allocation2 + $0x10] sm:$0xff] 0.0
    %22 = vst [vmem:[#allocation2 + $0x18] sm:$0xff] 0.0
    %23 = vst [vmem:[#allocation2 + $0x20] sm:$0xff] 0.0
    %24 = vst [vmem:[#allocation2 + $0x28] sm:$0xff] 0.0
    %25 = vst [vmem:[#allocation2 + $0x30] sm:$0xff] 0.0
    %26 = vst [vmem:[#allocation2 + $0x38] sm:$0xff] 0.0
    %27 = vst [vmem:[#allocation2 + $0x40] sm:$0xff] 0.0
    %28 = vst [vmem:[#allocation2 + $0x48] sm:$0xff] 0.0
    %29 = vst [vmem:[#allocation2 + $0x50] sm:$0xff] 0.0
    %30 = vst [vmem:[#allocation2 + $0x58] sm:$0xff] 0.0
    %31 = vst [vmem:[#allocation2 + $0x60] sm:$0xff] 0.0
    %32 = vst [vmem:[#allocation2 + $0x68] sm:$0xff] 0.0
    %33 = vst [vmem:[#allocation2 + $0x70] sm:$0xff] 0.0
    %34 = vst [vmem:[#allocation2 + $0x78] sm:$0xff] 0.0
  $region17: #{gcn_forward.5} parent=0 // pred_fallthru
    _
  %s35 = smul.u32 0, 128
  %v36 = vld [vmem:[#allocation2] sm:$0xff]
  %v37 = vld [vmem:[#allocation2 + $0x8] sm:$0xff]
  %v38 = vld [vmem:[#allocation2 + $0x10] sm:$0xff]
  %v39 = vld [vmem:[#allocation2 + $0x18] sm:$0xff]
  %v40 = vld [vmem:[#allocation2 + $0x20] sm:$0xff]
  %v41 = vld [vmem:[#allocation2 + $0x28] sm:$0xff]
  %v42 = vld [vmem:[#allocation2 + $0x30] sm:$0xff]
  %v43 = vld [vmem:[#allocation2 + $0x38] sm:$0xff]
  %v44 = vld [vmem:[#allocation2 + $0x40] sm:$0xff]
  %v45 = vld [vmem:[#allocation2 + $0x48] sm:$0xff]
  %v46 = vld [vmem:[#allocation2 + $0x50] sm:$0xff]
  %v47 = vld [vmem:[#allocation2 + $0x58] sm:$0xff]
  %v48 = vld [vmem:[#allocation2 + $0x60] sm:$0xff]
  %v49 = vld [vmem:[#allocation2 + $0x68] sm:$0xff]
  %v50 = vld [vmem:[#allocation2 + $0x70] sm:$0xff]
  %v51 = vld [vmem:[#allocation2 + $0x78] sm:$0xff]
  %v52 = vld [vmem:[%s0] sm:$0xf]
  %v53 = vld [vmem:[%s0 + $0x4] sm:$0xf]
  %v54 = vld [vmem:[%s0 + $0x8] sm:$0xf]
  %v55 = vld [vmem:[%s0 + $0xc] sm:$0xf]
  %v56 = vld [vmem:[%s0 + $0x10] sm:$0xf]
  %v57 = vld [vmem:[%s0 + $0x14] sm:$0xf]
  %v58 = vld [vmem:[%s0 + $0x18] sm:$0xf]
  %v59 = vld [vmem:[%s0 + $0x1c] sm:$0xf]
  %v60 = vld [vmem:[%s0 + $0x20] sm:$0xf]
  %v61 = vld [vmem:[%s0 + $0x24] sm:$0xf]
  %v62 = vld [vmem:[%s0 + $0x28] sm:$0xf]
  %v63 = vld [vmem:[%s0 + $0x2c] sm:$0xf]
  %v64 = vld [vmem:[%s0 + $0x30] sm:$0xf]
  %v65 = vld [vmem:[%s0 + $0x34] sm:$0xf]
  %v66 = vld [vmem:[%s0 + $0x38] sm:$0xf]
  %v67 = vld [vmem:[%s0 + $0x3c] sm:$0xf]
  %s68 = sshra.s32 %s35, 3
  %s69 = sand.u32 %s35, 7
  %s70 = smul.addr %s68, 4
  %s71 = scalar_lea.vmem %s1, %s70
  %v72 = vld [vmem:[%s71] sm:$0xf]
  %v73 = vld [vmem:[%s71 + $0x4] sm:$0xf]
  %v74 = vld [vmem:[%s71 + $0x8] sm:$0xf]
  %v75 = vld [vmem:[%s71 + $0xc] sm:$0xf]
  %v76 = vld [vmem:[%s71 + $0x10] sm:$0xf]
  %v77 = vld [vmem:[%s71 + $0x14] sm:$0xf]
  %v78 = vld [vmem:[%s71 + $0x18] sm:$0xf]
  %v79 = vld [vmem:[%s71 + $0x1c] sm:$0xf]
  %v80 = vld [vmem:[%s71 + $0x20] sm:$0xf]
  %v81 = vld [vmem:[%s71 + $0x24] sm:$0xf]
  %v82 = vld [vmem:[%s71 + $0x28] sm:$0xf]
  %v83 = vld [vmem:[%s71 + $0x2c] sm:$0xf]
  %v84 = vld [vmem:[%s71 + $0x30] sm:$0xf]
  %v85 = vld [vmem:[%s71 + $0x34] sm:$0xf]
  %v86 = vld [vmem:[%s71 + $0x38] sm:$0xf]
  %v87 = vld [vmem:[%s71 + $0x3c] sm:$0xf]
  %v104 = vunpack.c.l.b16 %v52
  %v105 = vunpack.c.l.b16 %v53
  %v106 = vunpack.c.l.b16 %v54
  %v107 = vunpack.c.l.b16 %v55
  %v108 = vunpack.c.l.b16 %v56
  %v109 = vunpack.c.l.b16 %v57
  %v110 = vunpack.c.l.b16 %v58
  %v111 = vunpack.c.l.b16 %v59
  %v112 = vunpack.c.l.b16 %v60
  %v113 = vunpack.c.l.b16 %v61
  %v114 = vunpack.c.l.b16 %v62
  %v115 = vunpack.c.l.b16 %v63
  %v116 = vunpack.c.l.b16 %v64
  %v117 = vunpack.c.l.b16 %v65
  %v118 = vunpack.c.l.b16 %v66
  %v119 = vunpack.c.l.b16 %v67
  %v120 = vpack.c.b16 %v105, %v104
  %v121 = vpack.c.b16 %v107, %v106
  %v122 = vpack.c.b16 %v109, %v108
  %v123 = vpack.c.b16 %v111, %v110
  %v124 = vpack.c.b16 %v113, %v112
  %v125 = vpack.c.b16 %v115, %v114
  %v126 = vpack.c.b16 %v117, %v116
  %v127 = vpack.c.b16 %v119, %v118
  %v152 = vunpack.c.l.b16 %v72
  %v153 = vunpack.c.l.b16 %v73
  %v154 = vunpack.c.l.b16 %v74
  %v155 = vunpack.c.l.b16 %v75
  %v156 = vunpack.c.l.b16 %v76
  %v157 = vunpack.c.l.b16 %v77
  %v158 = vunpack.c.l.b16 %v78
  %v159 = vunpack.c.l.b16 %v79
  %v160 = vunpack.c.l.b16 %v80
  %v161 = vunpack.c.l.b16 %v81
  %v162 = vunpack.c.l.b16 %v82
  %v163 = vunpack.c.l.b16 %v83
  %v164 = vunpack.c.l.b16 %v84
  %v165 = vunpack.c.l.b16 %v85
  %v166 = vunpack.c.l.b16 %v86
  %v167 = vunpack.c.l.b16 %v87
  %v168 = vpack.c.b16 %v153, %v152
  %v169 = vpack.c.b16 %v155, %v154
  %v170 = vpack.c.b16 %v157, %v156
  %v171 = vpack.c.b16 %v159, %v158
  %v172 = vpack.c.b16 %v161, %v160
  %v173 = vpack.c.b16 %v163, %v162
  %v174 = vpack.c.b16 %v165, %v164
  %v175 = vpack.c.b16 %v167, %v166
  %184 = vmatprep.subr.bf16.mxu0 0
  %185 = vmatpush1.bf16.msra.mxu0 %v175
  %186 = vmatprep.subr.bf16.mxu0 0
  %187 = vmatpush1.bf16.msra.mxu0 %v174
  %188 = vmatprep.subr.bf16.mxu0 0
  %189 = vmatpush1.bf16.msra.mxu0 %v173
  %190 = vmatprep.subr.bf16.mxu0 0
  %191 = vmatpush1.bf16.msra.mxu0 %v172
  %192 = vmatprep.subr.bf16.mxu0 0
  %193 = vmatpush1.bf16.msra.mxu0 %v171
  %194 = vmatprep.subr.bf16.mxu0 0
  %195 = vmatpush1.bf16.msra.mxu0 %v170
  %196 = vmatprep.subr.bf16.mxu0 0
  %197 = vmatpush1.bf16.msra.mxu0 %v169
  %198 = vmatprep.subr.bf16.mxu0 0
  %199 = vmatpush1.bf16.msra.mxu0 %v168
  %200 = vmatprep.subr.bf16.mxu0 0
  %201 = vmatpush2.bf16.msra.mxu0 0
  %202 = vmatprep.subr.bf16.mxu0 0
  %203 = vmatpush2.bf16.msra.mxu0 0
  %204 = vmatprep.subr.bf16.mxu0 0
  %205 = vmatpush2.bf16.msra.mxu0 0
  %206 = vmatprep.subr.bf16.mxu0 0
  %207 = vmatpush2.bf16.msra.mxu0 0
  %208 = vmatprep.subr.bf16.mxu0 0
  %209 = vmatpush2.bf16.msra.mxu0 0
  %210 = vmatprep.subr.bf16.mxu0 0
  %211 = vmatpush2.bf16.msra.mxu0 0
  %212 = vmatprep.subr.bf16.mxu0 0
  %213 = vmatpush2.bf16.msra.mxu0 0
  %214 = vmatprep.subr.bf16.mxu0 0
  %215 = vmatpush2.bf16.msra.mxu0 0
  %216 = vmatprep.mubr.bf16.mxu0 0
  %217 = vmatmul.mubr.bf16.gmra.mxu0 %v120
  %v218 = vpop.f32.mrf.mxu0
  %v219 = vadd.f32 0.0, %v218
  %v220 = vpop.f32.mrf.mxu0
  %v221 = vpop.f32.mrf.mxu0
  %v222 = vadd.f32 0.0, %v221
  %v223 = vpop.f32.mrf.mxu0
  %224 = vmatprep.mubr.bf16.mxu0 0
  %225 = vmatmul.mubr.bf16.gmra.mxu0 %v121
  %v226 = vpop.f32.mrf.mxu0
  %v227 = vadd.f32 0.0, %v226
  %v228 = vpop.f32.mrf.mxu0
  %v229 = vpop.f32.mrf.mxu0
  %v230 = vadd.f32 0.0, %v229
  %v231 = vpop.f32.mrf.mxu0
  %232 = vmatprep.mubr.bf16.mxu0 0
  %233 = vmatmul.mubr.bf16.gmra.mxu0 %v122
  %v234 = vpop.f32.mrf.mxu0
  %v235 = vadd.f32 0.0, %v234
  %v236 = vpop.f32.mrf.mxu0
  %v237 = vpop.f32.mrf.mxu0
  %v238 = vadd.f32 0.0, %v237
  %v239 = vpop.f32.mrf.mxu0
  %240 = vmatprep.mubr.bf16.mxu0 0
  %241 = vmatmul.mubr.bf16.gmra.mxu0 %v123
  %v242 = vpop.f32.mrf.mxu0
  %v243 = vadd.f32 0.0, %v242
  %v244 = vpop.f32.mrf.mxu0
  %v245 = vpop.f32.mrf.mxu0
  %v246 = vadd.f32 0.0, %v245
  %v247 = vpop.f32.mrf.mxu0
  %248 = vmatprep.mubr.bf16.mxu0 0
  %249 = vmatmul.mubr.bf16.gmra.mxu0 %v124
  %v250 = vpop.f32.mrf.mxu0
  %v251 = vadd.f32 0.0, %v250
  %v252 = vpop.f32.mrf.mxu0
  %v253 = vpop.f32.mrf.mxu0
  %v254 = vadd.f32 0.0, %v253
  %v255 = vpop.f32.mrf.mxu0
  %256 = vmatprep.mubr.bf16.mxu0 0
  %257 = vmatmul.mubr.bf16.gmra.mxu0 %v125
  %v258 = vpop.f32.mrf.mxu0
  %v259 = vadd.f32 0.0, %v258
  %v260 = vpop.f32.mrf.mxu0
  %v261 = vpop.f32.mrf.mxu0
  %v262 = vadd.f32 0.0, %v261
  %v263 = vpop.f32.mrf.mxu0
  %264 = vmatprep.mubr.bf16.mxu0 0
  %265 = vmatmul.mubr.bf16.gmra.mxu0 %v126
  %v266 = vpop.f32.mrf.mxu0
  %v267 = vadd.f32 0.0, %v266
  %v268 = vpop.f32.mrf.mxu0
  %v269 = vpop.f32.mrf.mxu0
  %v270 = vadd.f32 0.0, %v269
  %v271 = vpop.f32.mrf.mxu0
  %272 = vmatprep.mubr.bf16.mxu0 0
  %273 = vmatmul.mubr.bf16.gmra.mxu0 %v127
  %v274 = vpop.f32.mrf.mxu0
  %v275 = vadd.f32 0.0, %v274
  %v276 = vpop.f32.mrf.mxu0
  %v277 = vpop.f32.mrf.mxu0
  %v278 = vadd.f32 0.0, %v277
  %v279 = vpop.f32.mrf.mxu0
  %280 = vdwg.mxu0
  %v281 = vadd.f32 %v36, %v219
  %v282 = vadd.f32 %v37, %v222
  %v283 = vadd.f32 %v38, %v227
  %v284 = vadd.f32 %v39, %v230
  %v285 = vadd.f32 %v40, %v235
  %v286 = vadd.f32 %v41, %v238
  %v287 = vadd.f32 %v42, %v243
  %v288 = vadd.f32 %v43, %v246
  %v289 = vadd.f32 %v44, %v251
  %v290 = vadd.f32 %v45, %v254
  %v291 = vadd.f32 %v46, %v259
  %v292 = vadd.f32 %v47, %v262
  %v293 = vadd.f32 %v48, %v267
  %v294 = vadd.f32 %v49, %v270
  %v295 = vadd.f32 %v50, %v275
  %v296 = vadd.f32 %v51, %v278
  %297 = vst [vmem:[#allocation2] sm:$0xff] %v281
  %298 = vst [vmem:[#allocation2 + $0x8] sm:$0xff] %v282
  %299 = vst [vmem:[#allocation2 + $0x10] sm:$0xff] %v283
  %300 = vst [vmem:[#allocation2 + $0x18] sm:$0xff] %v284
  %301 = vst [vmem:[#allocation2 + $0x20] sm:$0xff] %v285
  %302 = vst [vmem:[#allocation2 + $0x28] sm:$0xff] %v286
  %303 = vst [vmem:[#allocation2 + $0x30] sm:$0xff] %v287
  %304 = vst [vmem:[#allocation2 + $0x38] sm:$0xff] %v288
  %305 = vst [vmem:[#allocation2 + $0x40] sm:$0xff] %v289
  %306 = vst [vmem:[#allocation2 + $0x48] sm:$0xff] %v290
  %307 = vst [vmem:[#allocation2 + $0x50] sm:$0xff] %v291
  %308 = vst [vmem:[#allocation2 + $0x58] sm:$0xff] %v292
  %309 = vst [vmem:[#allocation2 + $0x60] sm:$0xff] %v293
  %310 = vst [vmem:[#allocation2 + $0x68] sm:$0xff] %v294
  %311 = vst [vmem:[#allocation2 + $0x70] sm:$0xff] %v295
  %312 = vst [vmem:[#allocation2 + $0x78] sm:$0xff] %v296
  // Predicated region
  $region18: #{gcn_forward.5} parent=0 // pred_check
    %p313 = pneg %p15
  $region19: #{gcn_forward.5} parent=0 // pred_check_branch
    %315 = sbr.rel (%p313) target = $region21
  $region20: #{gcn_forward.5} parent=0 // pred_region
    %v316 = vld [vmem:[#allocation2] sm:$0xff]
    %v317 = vld [vmem:[#allocation2 + $0x8] sm:$0xff]
    %v318 = vld [vmem:[#allocation2 + $0x10] sm:$0xff]
    %v319 = vld [vmem:[#allocation2 + $0x18] sm:$0xff]
    %v320 = vld [vmem:[#allocation2 + $0x20] sm:$0xff]
    %v321 = vld [vmem:[#allocation2 + $0x28] sm:$0xff]
    %v322 = vld [vmem:[#allocation2 + $0x30] sm:$0xff]
    %v323 = vld [vmem:[#allocation2 + $0x38] sm:$0xff]
    %v324 = vld [vmem:[#allocation2 + $0x40] sm:$0xff]
    %v325 = vld [vmem:[#allocation2 + $0x48] sm:$0xff]
    %v326 = vld [vmem:[#allocation2 + $0x50] sm:$0xff]
    %v327 = vld [vmem:[#allocation2 + $0x58] sm:$0xff]
    %v328 = vld [vmem:[#allocation2 + $0x60] sm:$0xff]
    %v329 = vld [vmem:[#allocation2 + $0x68] sm:$0xff]
    %v330 = vld [vmem:[#allocation2 + $0x70] sm:$0xff]
    %v331 = vld [vmem:[#allocation2 + $0x78] sm:$0xff]
    %v332 = vld [vmem:[%s2] sm:$0x1]
    %v334 = vlaneseq
    %v335 = vshrl.u32 %v334, 7
    %v336 = vsub.s32 0, %v335
    %v337 = vrot.slane %v332, %v336
    %v339 = vadd.f32 %v316, %v337
    %v340 = vadd.f32 %v317, %v337
    %v341 = vadd.f32 %v318, %v337
    %v342 = vadd.f32 %v319, %v337
    %v343 = vadd.f32 %v320, %v337
    %v344 = vadd.f32 %v321, %v337
    %v345 = vadd.f32 %v322, %v337
    %v346 = vadd.f32 %v323, %v337
    %v347 = vadd.f32 %v324, %v337
    %v348 = vadd.f32 %v325, %v337
    %v349 = vadd.f32 %v326, %v337
    %v350 = vadd.f32 %v327, %v337
    %v351 = vadd.f32 %v328, %v337
    %v352 = vadd.f32 %v329, %v337
    %v353 = vadd.f32 %v330, %v337
    %v354 = vadd.f32 %v331, %v337
    %v355 = vmax.f32 %v339, 0.0
    %v356 = vmax.f32 %v340, 0.0
    %v357 = vmax.f32 %v341, 0.0
    %v358 = vmax.f32 %v342, 0.0
    %v359 = vmax.f32 %v343, 0.0
    %v360 = vmax.f32 %v344, 0.0
    %v361 = vmax.f32 %v345, 0.0
    %v362 = vmax.f32 %v346, 0.0
    %v363 = vmax.f32 %v347, 0.0
    %v364 = vmax.f32 %v348, 0.0
    %v365 = vmax.f32 %v349, 0.0
    %v366 = vmax.f32 %v350, 0.0
    %v367 = vmax.f32 %v351, 0.0
    %v368 = vmax.f32 %v352, 0.0
    %v369 = vmax.f32 %v353, 0.0
    %v370 = vmax.f32 %v354, 0.0
    %v371 = vpack.c.bf16 %v356, %v355
    %v372 = vpack.c.bf16 %v358, %v357
    %v373 = vpack.c.bf16 %v360, %v359
    %v374 = vpack.c.bf16 %v362, %v361
    %v375 = vpack.c.bf16 %v364, %v363
    %v376 = vpack.c.bf16 %v366, %v365
    %v377 = vpack.c.bf16 %v368, %v367
    %v378 = vpack.c.bf16 %v370, %v369
    %v387 = vunpack.c.l.b16 %v371
    %v388 = vunpack.c.h.b16 %v371
    %v389 = vunpack.c.l.b16 %v372
    %v390 = vunpack.c.h.b16 %v372
    %v391 = vunpack.c.l.b16 %v373
    %v392 = vunpack.c.h.b16 %v373
    %v393 = vunpack.c.l.b16 %v374
    %v394 = vunpack.c.h.b16 %v374
    %v395 = vunpack.c.l.b16 %v375
    %v396 = vunpack.c.h.b16 %v375
    %v397 = vunpack.c.l.b16 %v376
    %v398 = vunpack.c.h.b16 %v376
    %v399 = vunpack.c.l.b16 %v377
    %v400 = vunpack.c.h.b16 %v377
    %v401 = vunpack.c.l.b16 %v378
    %v402 = vunpack.c.h.b16 %v378
    %v403 = vpack.c.b16 %v387, %v387
    %v404 = vpack.c.b16 %v388, %v388
    %v405 = vpack.c.b16 %v389, %v389
    %v406 = vpack.c.b16 %v390, %v390
    %v407 = vpack.c.b16 %v391, %v391
    %v408 = vpack.c.b16 %v392, %v392
    %v409 = vpack.c.b16 %v393, %v393
    %v410 = vpack.c.b16 %v394, %v394
    %v411 = vpack.c.b16 %v395, %v395
    %v412 = vpack.c.b16 %v396, %v396
    %v413 = vpack.c.b16 %v397, %v397
    %v414 = vpack.c.b16 %v398, %v398
    %v415 = vpack.c.b16 %v399, %v399
    %v416 = vpack.c.b16 %v400, %v400
    %v417 = vpack.c.b16 %v401, %v401
    %v418 = vpack.c.b16 %v402, %v402
    %435 = vst [vmem:[%s3] sm:$0xf] %v403
    %436 = vst [vmem:[%s3 + $0x4] sm:$0xf] %v404
    %437 = vst [vmem:[%s3 + $0x8] sm:$0xf] %v405
    %438 = vst [vmem:[%s3 + $0xc] sm:$0xf] %v406
    %439 = vst [vmem:[%s3 + $0x10] sm:$0xf] %v407
    %440 = vst [vmem:[%s3 + $0x14] sm:$0xf] %v408
    %441 = vst [vmem:[%s3 + $0x18] sm:$0xf] %v409
    %442 = vst [vmem:[%s3 + $0x1c] sm:$0xf] %v410
    %443 = vst [vmem:[%s3 + $0x20] sm:$0xf] %v411
    %444 = vst [vmem:[%s3 + $0x24] sm:$0xf] %v412
    %445 = vst [vmem:[%s3 + $0x28] sm:$0xf] %v413
    %446 = vst [vmem:[%s3 + $0x2c] sm:$0xf] %v414
    %447 = vst [vmem:[%s3 + $0x30] sm:$0xf] %v415
    %448 = vst [vmem:[%s3 + $0x34] sm:$0xf] %v416
    %449 = vst [vmem:[%s3 + $0x38] sm:$0xf] %v417
    %450 = vst [vmem:[%s3 + $0x3c] sm:$0xf] %v418
  $region21: #{gcn_forward.5} parent=0 // pred_fallthru
    _
  // Predicated region
  $region22: #{gcn_forward.5} parent=0 // pred_check
    _
  $region23: #{gcn_forward.5} parent=0 // pred_check_branch
    %452 = sbr.rel (0) target = $region25
  $region24: #{gcn_forward.5} parent=0 // pred_region
    _
  $region25: #{gcn_forward.5} parent=0 // pred_fallthru
    _
  // Predicated region
  $region26: #{gcn_forward.5} parent=0 // pred_check
    _
  $region27: #{gcn_forward.5} parent=0 // pred_check_branch
    %454 = sbr.rel (0) target = $region29
  $region28: #{gcn_forward.5} parent=0 // pred_region
    _
  $region29: #{gcn_forward.5} parent=0 // pred_fallthru
    _

</llo_original>
